<compile_context>
chip_gen: v7x
topology: tpu7x:2x2x1
jax: 0.10.0
libtpu: 0.0.40
codegen_flags: <defaults>
</compile_context>

<pallas_src>
import jax
import jax.numpy as jnp
from jax.experimental import pallas as pl
from jax.experimental.pallas import tpu as pltpu


# ---------------------------------------------------------------------------
# Kernel
# ---------------------------------------------------------------------------
def _gin_conv_kernel(eps_ref, x_full_ref, x_tile_ref, idx_ref, w_ref, b_ref, out_ref):
    """One (batch, lane-tile) step of GINConv2d.

    eps_ref   : (1,)           f32  SMEM  -- learnable eps scalar
    x_full_ref: (C_in, Np)     bf16 VMEM  -- full batch slab (resident across N-tiles)
    x_tile_ref: (C_in, TN)     bf16 VMEM  -- x restricted to this lane tile
    idx_ref   : (K, TN)        i32  VMEM  -- neighbor ids of this tile's target vertices
    w_ref     : (C_out, C_in)  bf16 VMEM  -- block-diagonal grouped-conv weight (resident)
    b_ref     : (C_out, 1)     f32  VMEM  -- conv bias (resident)
    out_ref   : (C_out, TN)         VMEM
    """
    n_src = x_full_ref.shape[-1]
    tn = idx_ref.shape[-1]
    num_neighbors = idx_ref.shape[0]

    # Neighbor-count adjacency strip: counts[m, n] = #{k : idx[n, k] == m}.
    # Accumulated in int32 (cheap mask -> int add), converted to bf16 exactly once.
    row_m = jax.lax.broadcasted_iota(jnp.int32, (n_src, tn), 0)      # source vertex m
    counts = jnp.zeros((n_src, tn), jnp.int32)
    for k in range(num_neighbors):               # K is small & static -> unrolled
        counts = counts + (idx_ref[k:k + 1, :] == row_m).astype(jnp.int32)
    adj = counts.astype(jnp.bfloat16)            # small ints: exact in bf16

    # sum_k gather  ==  x @ counts : one bf16 MXU matmul with f32 accumulation.
    h = jnp.dot(x_full_ref[...], adj, preferred_element_type=jnp.float32)   # (C_in, TN)
    # (1+eps)*x added as a small elementwise FMA (NOT folded into the adjacency diagonal).
    h = h + (1.0 + eps_ref[0]) * x_tile_ref[...].astype(jnp.float32)

    # Grouped 1x1 conv as a single bf16 MXU matmul against the block-diagonal weight.
    y = jnp.dot(w_ref[...], h.astype(jnp.bfloat16),
                preferred_element_type=jnp.float32)
    y = y + b_ref[...]                                                       # bias in f32
    # BasicConv activation (ViG uses GELU); tanh-approx GELU maps onto the EUP.
    out_ref[...] = jax.nn.gelu(y, approximate=True).astype(out_ref.dtype)


# ---------------------------------------------------------------------------
# Wrapper
# ---------------------------------------------------------------------------
def _pick_lane_tile(n):
    """Lane (target-vertex) tile size: full axis when small, else a multiple of 128."""
    if n <= 512:
        return n
    for tn in (512, 256, 128):
        if n % tn == 0:
            return tn
    return 256               # ragged final tile; Pallas masks the partial stores


def gin_conv2d(x, edge_index, weight, bias, eps, *, groups=4):
    """Pallas implementation of GINConv2d.forward (y=None, norm_cfg=None, drop=0 path).

    x          : (B, C_in, N, 1) float
    edge_index : (2, B, N, K)    int   (only edge_index[0] is used, as in the module)
    weight     : (C_out, C_in // groups) float  (squeezed 1x1 grouped-conv kernel)
    bias       : (C_out,)        float
    eps        : scalar          float
    returns    : (B, C_out, N, 1), dtype of x
    """
    B, C_in, N, _ = x.shape
    C_out, C_g = weight.shape
    K = edge_index.shape[-1]
    assert C_in % groups == 0 and C_out % groups == 0 and C_g == C_in // groups

    xs = x.reshape(B, C_in, N)                              # drop trailing 1 (view)
    idx = edge_index[0].astype(jnp.int32)                   # (B, N, K)

    # Pack several batches onto the lane axis when N < 128 (lane-dense stores,
    # amortized per-step overhead).  Neighbor ids get per-sub-batch offsets so the
    # packed adjacency stays block-diagonal -- semantics are unchanged.
    pack = 1
    if N < 128 and B > 1:
        pack = min(B, max(1, 128 // N))
        while B % pack:
            pack -= 1
    if pack > 1:
        Bp, Np = B // pack, pack * N
        xs = xs.reshape(Bp, pack, C_in, N).transpose(0, 2, 1, 3).reshape(Bp, C_in, Np)
        offs = (jnp.arange(pack, dtype=jnp.int32) * N).reshape(1, pack, 1, 1)
        idx = (idx.reshape(Bp, pack, N, K) + offs).reshape(Bp, Np, K)
    else:
        Bp, Np = B, N

    xs_bf = xs.astype(jnp.bfloat16)                         # bf16 MXU operand
    idx_t = jnp.swapaxes(idx, 1, 2)                         # (Bp, K, Np), vertices on lanes

    # Block-diagonal grouped-conv weight (bf16) so the grouped conv is one MXU matmul.
    cgo = C_out // groups
    w_bd = jnp.zeros((C_out, C_in), jnp.float32)
    for g in range(groups):
        w_bd = w_bd.at[g * cgo:(g + 1) * cgo, g * C_g:(g + 1) * C_g].set(
            weight[g * cgo:(g + 1) * cgo].astype(jnp.float32))
    w_bd = w_bd.astype(jnp.bfloat16)
    b2 = bias.astype(jnp.float32).reshape(C_out, 1)
    eps_arr = jnp.reshape(jnp.asarray(eps, jnp.float32), (1,))

    tn = _pick_lane_tile(Np)
    num_tiles = pl.cdiv(Np, tn)

    # Explicit VMEM budget: resident x slab + streamed tiles + adjacency strip + weight.
    mib = 1024 * 1024
    out_isz = jnp.dtype(x.dtype).itemsize
    est = (2 * C_in * Np * 2 + 2 * C_in * tn * 2 + 2 * K * tn * 4
           + C_out * C_in * 2 + C_out * 4 + 2 * C_out * tn * out_isz
           + Np * tn * 6 + (C_in + C_out) * tn * 4)
    vmem_limit = int(min(64 * mib, max(32 * mib, 2 * est)))

    out = pl.pallas_call(
        _gin_conv_kernel,
        out_shape=jax.ShapeDtypeStruct((Bp, C_out, Np), x.dtype),
        grid=(Bp, num_tiles),
        in_specs=[
            pl.BlockSpec(memory_space=pltpu.MemorySpace.SMEM),        # eps scalar
            pl.BlockSpec((None, C_in, Np), lambda b, t: (b, 0, 0)),   # x slab (resident over t)
            pl.BlockSpec((None, C_in, tn), lambda b, t: (b, 0, t)),   # x lane tile
            pl.BlockSpec((None, K, tn), lambda b, t: (b, 0, t)),      # neighbor ids tile
            pl.BlockSpec((C_out, C_in), lambda b, t: (0, 0)),         # weight (resident)
            pl.BlockSpec((C_out, 1), lambda b, t: (0, 0)),            # bias (resident)
        ],
        out_specs=pl.BlockSpec((None, C_out, tn), lambda b, t: (b, 0, t)),
        compiler_params=pltpu.CompilerParams(
            dimension_semantics=("parallel", "parallel"),
            vmem_limit_bytes=vmem_limit),
    )(eps_arr, xs_bf, xs_bf, idx_t, w_bd, b2)

    if pack > 1:
        out = out.reshape(Bp, C_out, pack, N).transpose(0, 2, 1, 3).reshape(B, C_out, N)
    return out.reshape(B, C_out, N, 1)


# TODO(synk): the `y is not None` branch, a non-None norm_cfg (BatchNorm inside BasicConv)
# and Dropout2d are not implemented; the default GINConv2d config (y=None, norm_cfg=None,
# GELU activation, drop=0) is covered.
# TODO(synk): when C_out < C_in, reassociating to (W @ x) @ A would shrink the N^2 matmul;
# it is a no-op for ViG (C_out == C_in) so it is not implemented here.


# ---------------------------------------------------------------------------
# Pure-JAX reference
# ---------------------------------------------------------------------------
def _reference(x, edge_index, weight, bias, eps, *, groups=4, operand_dtype=None):
    """Pure-JAX reference.  operand_dtype=jnp.bfloat16 mirrors the kernel's MXU operand
    rounding (x, h, W rounded to bf16; accumulation in f32); None is the exact f32 path."""
    def rnd(a):
        a = jnp.asarray(a, jnp.float32)
        return a.astype(operand_dtype).astype(jnp.float32) if operand_dtype is not None else a

    B, C_in, N, _ = x.shape
    C_out, C_g = weight.shape
    xs = rnd(x[..., 0])                                       # (B, C_in, N)
    idx = edge_index[0]                                       # (B, N, K)
    gathered = jax.vmap(lambda xb, ib: xb[:, ib])(xs, idx)    # (B, C_in, N, K)
    h = rnd(gathered.sum(-1) + (1.0 + eps) * xs)
    w = rnd(weight)
    cgo = C_out // groups
    outs = []
    for g in range(groups):
        wg = w[g * cgo:(g + 1) * cgo]                         # (cgo, C_g)
        hg = h[:, g * C_g:(g + 1) * C_g]                      # (B, C_g, N)
        outs.append(jnp.einsum("oc,bcn->bon", wg, hg,
                               precision=jax.lax.Precision.HIGHEST))
    y = jnp.concatenate(outs, axis=1) + bias.astype(jnp.float32)[None, :, None]
    return jax.nn.gelu(y, approximate=True)[..., None]


if __name__ == "__main__":
    B, C_in, C_out, N, K, groups = 2, 32, 32, 16, 8, 4

    key = jax.random.PRNGKey(0)
    kx, ke, kw, kb = jax.random.split(key, 4)
    x = jax.random.normal(kx, (B, C_in, N, 1), jnp.float32)
    edge_index = jax.random.randint(ke, (2, B, N, K), 0, N, dtype=jnp.int32)
    weight = 0.2 * jax.random.normal(kw, (C_out, C_in // groups), jnp.float32)
    bias = 0.1 * jax.random.normal(kb, (C_out,), jnp.float32)
    eps = jnp.float32(0.25)   # module init is 0.0; nonzero exercises the (1+eps) term

    out = gin_conv2d(x, edge_index, weight, bias, eps, groups=groups)
    out = jax.block_until_ready(out)

    ref_exact = _reference(x, edge_index, weight, bias, eps, groups=groups)
    ref_mirror = _reference(x, edge_index, weight, bias, eps, groups=groups,
                            operand_dtype=jnp.bfloat16)
    assert out.shape == ref_exact.shape, (out.shape, ref_exact.shape)
    # Tight check vs a reference with the same bf16 MXU-operand rounding (proves the
    # gather/adjacency/grouped-conv logic), loose check vs the exact f32 reference
    # (documents the deliberate bf16-operand / tanh-GELU deviation).
    err_mirror = float(jnp.max(jnp.abs(out - ref_mirror)))
    err_exact = float(jnp.max(jnp.abs(out - ref_exact)))
    assert err_mirror < 1e-2, f"mirror-reference max abs error: {err_mirror}"
    assert err_exact < 1e-1, f"f32-reference max abs error: {err_exact}"
    print("KERNEL_OK")
</pallas_src>

<mosaic_0001>
module attributes {stable_mosaic.version = 11 : i64} {
  func.func @_gin_conv_kernel(%arg0: i32, %arg1: i32, %arg2: memref<1xf32, #tpu.memory_space<smem>>, %arg3: memref<1x32x32xbf16, #tpu.memory_space<vmem>>, %arg4: memref<1x32x32xbf16, #tpu.memory_space<vmem>>, %arg5: memref<1x8x32xi32, #tpu.memory_space<vmem>>, %arg6: memref<32x32xbf16, #tpu.memory_space<vmem>>, %arg7: memref<32x1xf32, #tpu.memory_space<vmem>>, %arg8: memref<1x32x32xf32, #tpu.memory_space<vmem>>) attributes {dimension_semantics = [#tpu.dimension_semantics<parallel>, #tpu.dimension_semantics<parallel>], iteration_bounds = array<i64: 1, 1>, scalar_prefetch = 0 : i64, scratch_operands = 0 : i64, tpu.core_type = #tpu.core_type<tc>, window_params = [{transform_indices = @transform_0, window_bounds = array<i64: 1>}, {transform_indices = @transform_1, window_bounds = array<i64: 1, 32, 32>}, {transform_indices = @transform_2, window_bounds = array<i64: 1, 32, 32>}, {transform_indices = @transform_3, window_bounds = array<i64: 1, 8, 32>}, {pipeline_mode = #tpu.pipeline_mode<synchronous>, transform_indices = @transform_4, window_bounds = array<i64: 32, 32>}, {pipeline_mode = #tpu.pipeline_mode<synchronous>, transform_indices = @transform_5, window_bounds = array<i64: 32, 1>}, {transform_indices = @transform_6, window_bounds = array<i64: 1, 32, 32>}]} {
    %0 = tpu.iota {dimensions = array<i32: 0>} : vector<32x32xi32>
    %c0_i32 = arith.constant 0 : i32
    %1 = vector.broadcast %c0_i32 : i32 to vector<32x32xi32>
    %c0 = arith.constant 0 : index
    %c0_0 = arith.constant 0 : index
    %c0_1 = arith.constant 0 : index
    %2 = vector.load %arg5[%c0, %c0_0, %c0_1] : memref<1x8x32xi32, #tpu.memory_space<vmem>>, vector<1x1x32xi32>
    %3 = vector.shape_cast %2 : vector<1x1x32xi32> to vector<1x32xi32>
    %4 = vector.broadcast %3 : vector<1x32xi32> to vector<32x32xi32>
    %5 = arith.cmpi eq, %4, %0 : vector<32x32xi32>
    %6 = arith.extui %5 : vector<32x32xi1> to vector<32x32xi32>
    %7 = arith.addi %1, %6 : vector<32x32xi32>
    %c0_2 = arith.constant 0 : index
    %c1 = arith.constant 1 : index
    %c0_3 = arith.constant 0 : index
    %8 = vector.load %arg5[%c0_2, %c1, %c0_3] : memref<1x8x32xi32, #tpu.memory_space<vmem>>, vector<1x1x32xi32>
    %9 = vector.shape_cast %8 : vector<1x1x32xi32> to vector<1x32xi32>
    %10 = vector.broadcast %9 : vector<1x32xi32> to vector<32x32xi32>
    %11 = arith.cmpi eq, %10, %0 : vector<32x32xi32>
    %12 = arith.extui %11 : vector<32x32xi1> to vector<32x32xi32>
    %13 = arith.addi %7, %12 : vector<32x32xi32>
    %c0_4 = arith.constant 0 : index
    %c2 = arith.constant 2 : index
    %c0_5 = arith.constant 0 : index
    %14 = vector.load %arg5[%c0_4, %c2, %c0_5] : memref<1x8x32xi32, #tpu.memory_space<vmem>>, vector<1x1x32xi32>
    %15 = vector.shape_cast %14 : vector<1x1x32xi32> to vector<1x32xi32>
    %16 = vector.broadcast %15 : vector<1x32xi32> to vector<32x32xi32>
    %17 = arith.cmpi eq, %16, %0 : vector<32x32xi32>
    %18 = arith.extui %17 : vector<32x32xi1> to vector<32x32xi32>
    %19 = arith.addi %13, %18 : vector<32x32xi32>
    %c0_6 = arith.constant 0 : index
    %c3 = arith.constant 3 : index
    %c0_7 = arith.constant 0 : index
    %20 = vector.load %arg5[%c0_6, %c3, %c0_7] : memref<1x8x32xi32, #tpu.memory_space<vmem>>, vector<1x1x32xi32>
    %21 = vector.shape_cast %20 : vector<1x1x32xi32> to vector<1x32xi32>
    %22 = vector.broadcast %21 : vector<1x32xi32> to vector<32x32xi32>
    %23 = arith.cmpi eq, %22, %0 : vector<32x32xi32>
    %24 = arith.extui %23 : vector<32x32xi1> to vector<32x32xi32>
    %25 = arith.addi %19, %24 : vector<32x32xi32>
    %c0_8 = arith.constant 0 : index
    %c4 = arith.constant 4 : index
    %c0_9 = arith.constant 0 : index
    %26 = vector.load %arg5[%c0_8, %c4, %c0_9] : memref<1x8x32xi32, #tpu.memory_space<vmem>>, vector<1x1x32xi32>
    %27 = vector.shape_cast %26 : vector<1x1x32xi32> to vector<1x32xi32>
    %28 = vector.broadcast %27 : vector<1x32xi32> to vector<32x32xi32>
    %29 = arith.cmpi eq, %28, %0 : vector<32x32xi32>
    %30 = arith.extui %29 : vector<32x32xi1> to vector<32x32xi32>
    %31 = arith.addi %25, %30 : vector<32x32xi32>
    %c0_10 = arith.constant 0 : index
    %c5 = arith.constant 5 : index
    %c0_11 = arith.constant 0 : index
    %32 = vector.load %arg5[%c0_10, %c5, %c0_11] : memref<1x8x32xi32, #tpu.memory_space<vmem>>, vector<1x1x32xi32>
    %33 = vector.shape_cast %32 : vector<1x1x32xi32> to vector<1x32xi32>
    %34 = vector.broadcast %33 : vector<1x32xi32> to vector<32x32xi32>
    %35 = arith.cmpi eq, %34, %0 : vector<32x32xi32>
    %36 = arith.extui %35 : vector<32x32xi1> to vector<32x32xi32>
    %37 = arith.addi %31, %36 : vector<32x32xi32>
    %c0_12 = arith.constant 0 : index
    %c6 = arith.constant 6 : index
    %c0_13 = arith.constant 0 : index
    %38 = vector.load %arg5[%c0_12, %c6, %c0_13] : memref<1x8x32xi32, #tpu.memory_space<vmem>>, vector<1x1x32xi32>
    %39 = vector.shape_cast %38 : vector<1x1x32xi32> to vector<1x32xi32>
    %40 = vector.broadcast %39 : vector<1x32xi32> to vector<32x32xi32>
    %41 = arith.cmpi eq, %40, %0 : vector<32x32xi32>
    %42 = arith.extui %41 : vector<32x32xi1> to vector<32x32xi32>
    %43 = arith.addi %37, %42 : vector<32x32xi32>
    %c0_14 = arith.constant 0 : index
    %c7 = arith.constant 7 : index
    %c0_15 = arith.constant 0 : index
    %44 = vector.load %arg5[%c0_14, %c7, %c0_15] : memref<1x8x32xi32, #tpu.memory_space<vmem>>, vector<1x1x32xi32>
    %45 = vector.shape_cast %44 : vector<1x1x32xi32> to vector<1x32xi32>
    %46 = vector.broadcast %45 : vector<1x32xi32> to vector<32x32xi32>
    %47 = arith.cmpi eq, %46, %0 : vector<32x32xi32>
    %48 = arith.extui %47 : vector<32x32xi1> to vector<32x32xi32>
    %49 = arith.addi %43, %48 : vector<32x32xi32>
    %50 = arith.sitofp %49 : vector<32x32xi32> to vector<32x32xbf16>
    %c0_16 = arith.constant 0 : index
    %c0_17 = arith.constant 0 : index
    %c0_18 = arith.constant 0 : index
    %51 = vector.load %arg3[%c0_16, %c0_17, %c0_18] : memref<1x32x32xbf16, #tpu.memory_space<vmem>>, vector<1x32x32xbf16>
    %52 = vector.shape_cast %51 : vector<1x32x32xbf16> to vector<32x32xbf16>
    %cst = arith.constant dense<0.000000e+00> : vector<32x32xf32>
    %53 = tpu.matmul %52, %50, %cst {dimension_numbers = #tpu.dot_dimension_numbers<[1], [0], [0], [1], [0, 0, 1, 1], [], []>} : vector<32x32xbf16>, vector<32x32xbf16>, vector<32x32xf32> -> vector<32x32xf32>
    %c0_19 = arith.constant 0 : index
    %54 = memref.load %arg2[%c0_19] : memref<1xf32, #tpu.memory_space<smem>>
    %cst_20 = arith.constant 1.000000e+00 : f32
    %55 = arith.addf %cst_20, %54 : f32
    %c0_21 = arith.constant 0 : index
    %c0_22 = arith.constant 0 : index
    %c0_23 = arith.constant 0 : index
    %56 = vector.load %arg4[%c0_21, %c0_22, %c0_23] : memref<1x32x32xbf16, #tpu.memory_space<vmem>>, vector<1x32x32xbf16>
    %57 = vector.shape_cast %56 : vector<1x32x32xbf16> to vector<32x32xbf16>
    %58 = arith.extf %57 : vector<32x32xbf16> to vector<32x32xf32>
    %59 = vector.broadcast %55 : f32 to vector<32x32xf32>
    %60 = arith.mulf %59, %58 : vector<32x32xf32>
    %61 = arith.addf %53, %60 : vector<32x32xf32>
    %c0_24 = arith.constant 0 : index
    %c0_25 = arith.constant 0 : index
    %62 = vector.load %arg6[%c0_24, %c0_25] : memref<32x32xbf16, #tpu.memory_space<vmem>>, vector<32x32xbf16>
    %63 = arith.truncf %61 : vector<32x32xf32> to vector<32x32xbf16>
    %cst_26 = arith.constant dense<0.000000e+00> : vector<32x32xf32>
    %64 = tpu.matmul %62, %63, %cst_26 {dimension_numbers = #tpu.dot_dimension_numbers<[1], [0], [0], [1], [0, 0, 1, 1], [], []>} : vector<32x32xbf16>, vector<32x32xbf16>, vector<32x32xf32> -> vector<32x32xf32>
    %c0_27 = arith.constant 0 : index
    %c0_28 = arith.constant 0 : index
    %65 = vector.load %arg7[%c0_27, %c0_28] : memref<32x1xf32, #tpu.memory_space<vmem>>, vector<32x1xf32>
    %66 = vector.broadcast %65 : vector<32x1xf32> to vector<32x32xf32>
    %67 = arith.addf %64, %66 : vector<32x32xf32>
    %68 = arith.mulf %67, %67 : vector<32x32xf32>
    %69 = arith.mulf %67, %68 : vector<32x32xf32>
    %cst_29 = arith.constant 4.471500e-02 : f32
    %70 = vector.broadcast %cst_29 : f32 to vector<32x32xf32>
    %71 = arith.mulf %70, %69 : vector<32x32xf32>
    %72 = arith.addf %67, %71 : vector<32x32xf32>
    %cst_30 = arith.constant 0.797884583 : f32
    %73 = vector.broadcast %cst_30 : f32 to vector<32x32xf32>
    %74 = arith.mulf %73, %72 : vector<32x32xf32>
    %75 = math.tanh %74 : vector<32x32xf32>
    %cst_31 = arith.constant 1.000000e+00 : f32
    %76 = vector.broadcast %cst_31 : f32 to vector<32x32xf32>
    %77 = arith.addf %76, %75 : vector<32x32xf32>
    %cst_32 = arith.constant 5.000000e-01 : f32
    %78 = vector.broadcast %cst_32 : f32 to vector<32x32xf32>
    %79 = arith.mulf %78, %77 : vector<32x32xf32>
    %80 = arith.mulf %67, %79 : vector<32x32xf32>
    %c0_33 = arith.constant 0 : index
    %c0_34 = arith.constant 0 : index
    %c0_35 = arith.constant 0 : index
    %81 = vector.load %arg8[%c0_33, %c0_34, %c0_35] : memref<1x32x32xf32, #tpu.memory_space<vmem>>, vector<1x32x32xf32>
    %82 = vector.shape_cast %81 : vector<1x32x32xf32> to vector<32x32xf32>
    %83 = vector.shape_cast %80 : vector<32x32xf32> to vector<1x32x32xf32>
    tpu.vector_store %arg8[%c0_33, %c0_34, %c0_35], %83 {strides = array<i32>} : memref<1x32x32xf32, #tpu.memory_space<vmem>>, vector<1x32x32xf32>,
    return
  }
  func.func @transform_0(%arg0: i32, %arg1: i32) -> i32 {
    %c0_i32 = arith.constant 0 : i32
    %c0_i32_0 = arith.constant 0 : i32
    return %c0_i32 : i32
  }
  func.func @transform_1(%arg0: i32, %arg1: i32) -> (i32, i32, i32) {
    %c0_i32 = arith.constant 0 : i32
    %c0_i32_0 = arith.constant 0 : i32
    %c0_i32_1 = arith.constant 0 : i32
    return %arg0, %c0_i32, %c0_i32_0 : i32, i32, i32
  }
  func.func @transform_2(%arg0: i32, %arg1: i32) -> (i32, i32, i32) {
    %c0_i32 = arith.constant 0 : i32
    %c0_i32_0 = arith.constant 0 : i32
    return %arg0, %c0_i32, %arg1 : i32, i32, i32
  }
  func.func @transform_3(%arg0: i32, %arg1: i32) -> (i32, i32, i32) {
    %c0_i32 = arith.constant 0 : i32
    %c0_i32_0 = arith.constant 0 : i32
    return %arg0, %c0_i32, %arg1 : i32, i32, i32
  }
  func.func @transform_4(%arg0: i32, %arg1: i32) -> (i32, i32) {
    %c0_i32 = arith.constant 0 : i32
    %c0_i32_0 = arith.constant 0 : i32
    %c0_i32_1 = arith.constant 0 : i32
    return %c0_i32, %c0_i32_0 : i32, i32
  }
  func.func @transform_5(%arg0: i32, %arg1: i32) -> (i32, i32) {
    %c0_i32 = arith.constant 0 : i32
    %c0_i32_0 = arith.constant 0 : i32
    %c0_i32_1 = arith.constant 0 : i32
    return %c0_i32, %c0_i32_0 : i32, i32
  }
  func.func @transform_6(%arg0: i32, %arg1: i32) -> (i32, i32, i32) {
    %c0_i32 = arith.constant 0 : i32
    %c0_i32_0 = arith.constant 0 : i32
    return %arg0, %c0_i32, %arg1 : i32, i32, i32
  }
}

</mosaic_0001>

<llo_original>
// kernel: tpu_custom_call.1
$region0: #{tpu_custom_call.1}
  #allocation0 [shape = 'u32[]', space=smem, size = 0x4, offset = 0x4, fixed_abs, tag = 'smem constant byte address 0x4 - core index']
  #allocation1 [shape = 'u32[144,128]{1,0:T(1,128)}', space=vmem, size = 0x12000, scoped, tag = 'internal scratch']
  #allocation2 [shape = 'f32[1]{0:T(128)S(6)}', space=smem, size = 0x200, scoped, tag = 'scoped memory for tpu_custom_call.1']
  %s0 = inlined_call_operand.<no memory space> [shape: f32[1], index: 0, kind: input, shape index: {}]
  %s1 = inlined_call_operand.vmem [shape: bf16[1,32,32], index: 1, kind: input, shape index: {}]
  %s2 = inlined_call_operand.vmem [shape: bf16[1,32,32], index: 2, kind: input, shape index: {}]
  %s3 = inlined_call_operand.hbm [shape: s32[1,8,32], index: 3, kind: input, shape index: {}]
  %s4 = inlined_call_operand.vmem [shape: bf16[32,32], index: 4, kind: input, shape index: {}]
  %s5 = inlined_call_operand.vmem [shape: f32[32,1], index: 5, kind: input, shape index: {}]
  %s6 = inlined_call_operand.hbm [shape: f32[1,32,32], index: 6, kind: output, shape index: {}]
  %s7 = sld [smem:[#allocation0]]
  $region38: #{tpu_custom_call.1} parent=0
    _
  %s9 = ssub.s32 1, %s7
  %s10 = scalar_select 0, %s9, %s7
  %11 = sst [smem:[#allocation2]] %s0
  $region1: #{tpu_custom_call.1} parent=0
    #allocation3 [shape = 'u8[4096]{0}', space=vmem, size = 0x1000, scoped, tag = 'input window, operand 3, single buffered']
    #allocation4 [shape = 's32[1]{0}', space=sflag, size = 0x4, scoped, tag = 'scoped memory for tpu_custom_call.1']
    #allocation5 [shape = 's32[1]{0}', space=sflag, size = 0x4, scoped, tag = 'scoped memory for tpu_custom_call.1']
    #allocation6 [shape = 'u8[16384]{0}', space=vmem, size = 0x4000, scoped, tag = 'output window, operand 0, single buffered']
    %12 = vsyncpa [#allocation4], 0
    %13 = vsyncpa [#allocation5], 0
    // Predicated region
    $region2: #{tpu_custom_call.1} parent=1 // pred_check
      _
    $region3: #{tpu_custom_call.1} parent=1 // pred_check_branch
      %15 = sbr.rel (0) target = $region5
    $region4: #{tpu_custom_call.1} parent=1 // pred_region
      _
    $region5: #{tpu_custom_call.1} parent=1 // pred_fallthru
      _
    // Predicated region
    $region6: #{tpu_custom_call.1} parent=1 // pred_check
      _
    $region7: #{tpu_custom_call.1} parent=1 // pred_check_branch
      %17 = sbr.rel (0) target = $region9
    $region8: #{tpu_custom_call.1} parent=1 // pred_region
      _
    $region9: #{tpu_custom_call.1} parent=1 // pred_fallthru
      _
    // Predicated region
    $region10: #{tpu_custom_call.1} parent=1 // pred_check
      _
    $region11: #{tpu_custom_call.1} parent=1 // pred_check_branch
      %19 = sbr.rel (0) target = $region13
    $region12: #{tpu_custom_call.1} parent=1 // pred_region
      _
    $region13: #{tpu_custom_call.1} parent=1 // pred_fallthru
      _
    // Predicated region
    $region14: #{tpu_custom_call.1} parent=1 // pred_check
      _
    $region15: #{tpu_custom_call.1} parent=1 // pred_check_branch
      %21 = sbr.rel (0) target = $region17
    $region16: #{tpu_custom_call.1} parent=1 // pred_region
      %s23 = ssub.s32 128, 128
      %24 = vsyncadd [#allocation4], %s23
      %s26 = sshll.u32 [#allocation3], 4
      %s27 = int_to_ptr.vmem [resolvable:$true] %s26
      %29 = dma.hbm_to_vmem [thread:$0]  %s3, 128, %s27, [#allocation4]
    $region17: #{tpu_custom_call.1} parent=1 // pred_fallthru
      _
    // Predicated region
    $region18: #{tpu_custom_call.1} parent=1 // pred_check
      _
    $region19: #{tpu_custom_call.1} parent=1 // pred_check_branch
      %31 = sbr.rel (0) target = $region21
    $region20: #{tpu_custom_call.1} parent=1 // pred_region
      _
    $region21: #{tpu_custom_call.1} parent=1 // pred_fallthru
      _
    // Predicated region
    $region22: #{tpu_custom_call.1} parent=1 // pred_check
      _
    $region23: #{tpu_custom_call.1} parent=1 // pred_check_branch
      %33 = sbr.rel (0) target = $region25
    $region24: #{tpu_custom_call.1} parent=1 // pred_region
      _
    $region25: #{tpu_custom_call.1} parent=1 // pred_fallthru
      _
    // Predicated region
    $region26: #{tpu_custom_call.1} parent=1 // pred_check
      _
    $region27: #{tpu_custom_call.1} parent=1 // pred_check_branch
      %35 = sbr.rel (0) target = $region29
    $region28: #{tpu_custom_call.1} parent=1 // pred_region
      %36 = dma.done [#allocation4], 128
    $region29: #{tpu_custom_call.1} parent=1 // pred_fallthru
      _
    %v38 = vlaneseq
    %v39 = vshrl.u32 %v38, 7
    %v40 = vadd.s32 %v39, 8
    %v41 = vadd.s32 %v39, 16
    %v42 = vadd.s32 %v39, 24
    %v43 = vld [vmem:[#allocation3] sm:$0x1]
    %v44 = vlaneseq
    %v45 = vshrl.u32 %v44, 7
    %v46 = vsub.s32 0, %v45
    %v47 = vrot.slane %v43, %v46
    %vm48 = vcmp.eq.s32.totalorder %v47, %v39
    %vm49 = vcmp.eq.s32.totalorder %v47, %v40
    %vm50 = vcmp.eq.s32.totalorder %v47, %v41
    %vm51 = vcmp.eq.s32.totalorder %v47, %v42
    %v52 = vsel %vm48, 1, 0
    %v53 = vsel %vm49, 1, 0
    %v54 = vsel %vm50, 1, 0
    %v55 = vsel %vm51, 1, 0
    %v56 = vld [vmem:[#allocation3 + $0x1] sm:$0x1]
    %v57 = vlaneseq
    %v58 = vshrl.u32 %v57, 7
    %v59 = vsub.s32 0, %v58
    %v60 = vrot.slane %v56, %v59
    %vm61 = vcmp.eq.s32.totalorder %v60, %v39
    %vm62 = vcmp.eq.s32.totalorder %v60, %v40
    %vm63 = vcmp.eq.s32.totalorder %v60, %v41
    %vm64 = vcmp.eq.s32.totalorder %v60, %v42
    %v65 = vsel %vm61, 1, 0
    %v66 = vsel %vm62, 1, 0
    %v67 = vsel %vm63, 1, 0
    %v68 = vsel %vm64, 1, 0
    %v69 = vadd.s32 %v52, %v65
    %v70 = vadd.s32 %v53, %v66
    %v71 = vadd.s32 %v54, %v67
    %v72 = vadd.s32 %v55, %v68
    %v73 = vld [vmem:[#allocation3 + $0x2] sm:$0x1]
    %v74 = vlaneseq
    %v75 = vshrl.u32 %v74, 7
    %v76 = vsub.s32 0, %v75
    %v77 = vrot.slane %v73, %v76
    %vm78 = vcmp.eq.s32.totalorder %v77, %v39
    %vm79 = vcmp.eq.s32.totalorder %v77, %v40
    %vm80 = vcmp.eq.s32.totalorder %v77, %v41
    %vm81 = vcmp.eq.s32.totalorder %v77, %v42
    %v82 = vsel %vm78, 1, 0
    %v83 = vsel %vm79, 1, 0
    %v84 = vsel %vm80, 1, 0
    %v85 = vsel %vm81, 1, 0
    %v86 = vadd.s32 %v69, %v82
    %v87 = vadd.s32 %v70, %v83
    %v88 = vadd.s32 %v71, %v84
    %v89 = vadd.s32 %v72, %v85
    %v90 = vld [vmem:[#allocation3 + $0x3] sm:$0x1]
    %v91 = vlaneseq
    %v92 = vshrl.u32 %v91, 7
    %v93 = vsub.s32 0, %v92
    %v94 = vrot.slane %v90, %v93
    %vm95 = vcmp.eq.s32.totalorder %v94, %v39
    %vm96 = vcmp.eq.s32.totalorder %v94, %v40
    %vm97 = vcmp.eq.s32.totalorder %v94, %v41
    %vm98 = vcmp.eq.s32.totalorder %v94, %v42
    %v99 = vsel %vm95, 1, 0
    %v100 = vsel %vm96, 1, 0
    %v101 = vsel %vm97, 1, 0
    %v102 = vsel %vm98, 1, 0
    %v103 = vadd.s32 %v86, %v99
    %v104 = vadd.s32 %v87, %v100
    %v105 = vadd.s32 %v88, %v101
    %v106 = vadd.s32 %v89, %v102
    %v107 = vld [vmem:[#allocation3 + $0x4] sm:$0x1]
    %v108 = vlaneseq
    %v109 = vshrl.u32 %v108, 7
    %v110 = vsub.s32 0, %v109
    %v111 = vrot.slane %v107, %v110
    %vm112 = vcmp.eq.s32.totalorder %v111, %v39
    %vm113 = vcmp.eq.s32.totalorder %v111, %v40
    %vm114 = vcmp.eq.s32.totalorder %v111, %v41
    %vm115 = vcmp.eq.s32.totalorder %v111, %v42
    %v116 = vsel %vm112, 1, 0
    %v117 = vsel %vm113, 1, 0
    %v118 = vsel %vm114, 1, 0
    %v119 = vsel %vm115, 1, 0
    %v120 = vadd.s32 %v103, %v116
    %v121 = vadd.s32 %v104, %v117
    %v122 = vadd.s32 %v105, %v118
    %v123 = vadd.s32 %v106, %v119
    %v124 = vld [vmem:[#allocation3 + $0x5] sm:$0x1]
    %v125 = vlaneseq
    %v126 = vshrl.u32 %v125, 7
    %v127 = vsub.s32 0, %v126
    %v128 = vrot.slane %v124, %v127
    %vm129 = vcmp.eq.s32.totalorder %v128, %v39
    %vm130 = vcmp.eq.s32.totalorder %v128, %v40
    %vm131 = vcmp.eq.s32.totalorder %v128, %v41
    %vm132 = vcmp.eq.s32.totalorder %v128, %v42
    %v133 = vsel %vm129, 1, 0
    %v134 = vsel %vm130, 1, 0
    %v135 = vsel %vm131, 1, 0
    %v136 = vsel %vm132, 1, 0
    %v137 = vadd.s32 %v120, %v133
    %v138 = vadd.s32 %v121, %v134
    %v139 = vadd.s32 %v122, %v135
    %v140 = vadd.s32 %v123, %v136
    %v141 = vld [vmem:[#allocation3 + $0x6] sm:$0x1]
    %v142 = vlaneseq
    %v143 = vshrl.u32 %v142, 7
    %v144 = vsub.s32 0, %v143
    %v145 = vrot.slane %v141, %v144
    %vm146 = vcmp.eq.s32.totalorder %v145, %v39
    %vm147 = vcmp.eq.s32.totalorder %v145, %v40
    %vm148 = vcmp.eq.s32.totalorder %v145, %v41
    %vm149 = vcmp.eq.s32.totalorder %v145, %v42
    %v150 = vsel %vm146, 1, 0
    %v151 = vsel %vm147, 1, 0
    %v152 = vsel %vm148, 1, 0
    %v153 = vsel %vm149, 1, 0
    %v154 = vadd.s32 %v137, %v150
    %v155 = vadd.s32 %v138, %v151
    %v156 = vadd.s32 %v139, %v152
    %v157 = vadd.s32 %v140, %v153
    %v158 = vld [vmem:[#allocation3 + $0x7] sm:$0x1]
    %v159 = vlaneseq
    %v160 = vshrl.u32 %v159, 7
    %v161 = vsub.s32 0, %v160
    %v162 = vrot.slane %v158, %v161
    %vm163 = vcmp.eq.s32.totalorder %v162, %v39
    %vm164 = vcmp.eq.s32.totalorder %v162, %v40
    %vm165 = vcmp.eq.s32.totalorder %v162, %v41
    %vm166 = vcmp.eq.s32.totalorder %v162, %v42
    %v167 = vsel %vm163, 1, 0
    %v168 = vsel %vm164, 1, 0
    %v169 = vsel %vm165, 1, 0
    %v170 = vsel %vm166, 1, 0
    %v171 = vadd.s32 %v154, %v167
    %v172 = vadd.s32 %v155, %v168
    %v173 = vadd.s32 %v156, %v169
    %v174 = vadd.s32 %v157, %v170
    %v175 = vcvt.s32.f32 %v171
    %v176 = vcvt.s32.f32 %v172
    %v177 = vcvt.s32.f32 %v173
    %v178 = vcvt.s32.f32 %v174
    %v179 = vpack.c.bf16 %v176, %v175
    %v180 = vpack.c.bf16 %v178, %v177
    %v181 = vld [vmem:[%s1] sm:$0xf]
    %v182 = vld [vmem:[%s1 + $0x4] sm:$0xf]
    %v183 = vld [vmem:[%s1 + $0x8] sm:$0xf]
    %v184 = vld [vmem:[%s1 + $0xc] sm:$0xf]
    %s185 = sld [smem:[#allocation2]]
    %s186 = sadd.f32 %s185, 1.0
    %v187 = vld [vmem:[%s2] sm:$0xf]
    %v188 = vld [vmem:[%s2 + $0x4] sm:$0xf]
    %v189 = vld [vmem:[%s2 + $0x8] sm:$0xf]
    %v190 = vld [vmem:[%s2 + $0xc] sm:$0xf]
    %v191 = vunpack.c.l.bf16 %v187
    %v192 = vunpack.c.l.bf16 %v188
    %v193 = vunpack.c.l.bf16 %v189
    %v194 = vunpack.c.l.bf16 %v190
    %v195 = vstv %s186
    %v196 = vmul.f32 %v195, %v191
    %v197 = vmul.f32 %v195, %v192
    %v198 = vmul.f32 %v195, %v193
    %v199 = vmul.f32 %v195, %v194
    %v204 = vunpack.c.l.b16 %v181
    %v205 = vunpack.c.l.b16 %v182
    %v206 = vunpack.c.l.b16 %v183
    %v207 = vunpack.c.l.b16 %v184
    %v208 = vpack.c.b16 %v205, %v204
    %v209 = vpack.c.b16 %v207, %v206
    %vm210 = vcmask 261120
    %v212 = vsel %vm210, %v208, 0
    %v215 = vsel %vm210, %v209, 0
    %217 = vmatprep.subr.bf16.mxu0 0
    %218 = vmatpush1.bf16.msra.mxu0 %v179
    %219 = vmatprep.subr.bf16.mxu0 0
    %220 = vmatpush1.bf16.msra.mxu0 %v180
    %221 = vmatprep.subr.bf16.mxu0 0
    %222 = vmatpush1.bf16.msra.mxu0 0
    %223 = vmatprep.subr.bf16.mxu0 0
    %224 = vmatpush1.bf16.msra.mxu0 0
    %225 = vmatprep.subr.bf16.mxu0 0
    %226 = vmatpush1.bf16.msra.mxu0 0
    %227 = vmatprep.subr.bf16.mxu0 0
    %228 = vmatpush1.bf16.msra.mxu0 0
    %229 = vmatprep.subr.bf16.mxu0 0
    %230 = vmatpush1.bf16.msra.mxu0 0
    %231 = vmatprep.subr.bf16.mxu0 0
    %232 = vmatpush1.bf16.msra.mxu0 0
    %233 = vmatprep.subr.bf16.mxu0 0
    %234 = vmatpush1.bf16.msra.mxu0 0
    %235 = vmatprep.subr.bf16.mxu0 0
    %236 = vmatpush1.bf16.msra.mxu0 0
    %237 = vmatprep.subr.bf16.mxu0 0
    %238 = vmatpush1.bf16.msra.mxu0 0
    %239 = vmatprep.subr.bf16.mxu0 0
    %240 = vmatpush1.bf16.msra.mxu0 0
    %241 = vmatprep.subr.bf16.mxu0 0
    %242 = vmatpush1.bf16.msra.mxu0 0
    %243 = vmatprep.subr.bf16.mxu0 0
    %244 = vmatpush1.bf16.msra.mxu0 0
    %245 = vmatprep.subr.bf16.mxu0 0
    %246 = vmatpush1.bf16.msra.mxu0 0
    %247 = vmatprep.subr.bf16.mxu0 0
    %248 = vmatpush1.bf16.msra.mxu0 0
    %249 = vmatprep.mubr.bf16.mxu0 0
    %250 = vmatmul.mubr.bf16.gmra.mrb[0].mxu0 %v212
    %v251 = vpop.f32.mrb[0].mxu0
    %v252 = vadd.f32 %v196, %v251
    %v253 = vpop.f32.mrb[0].mxu0
    %v254 = vpop.f32.mrb[0].mxu0
    %v255 = vadd.f32 %v197, %v254
    %v256 = vpop.f32.mrb[0].mxu0
    %257 = vmatprep.mubr.bf16.mxu0 0
    %258 = vmatmul.mubr.bf16.gmra.mrb[0].mxu0 %v215
    %v259 = vpop.f32.mrb[0].mxu0
    %v260 = vadd.f32 %v198, %v259
    %v261 = vpop.f32.mrb[0].mxu0
    %v262 = vpop.f32.mrb[0].mxu0
    %v263 = vadd.f32 %v199, %v262
    %v264 = vpop.f32.mrb[0].mxu0
    %265 = vdwg.mxu0
    %v266 = vld [vmem:[%s4] sm:$0xf]
    %v267 = vld [vmem:[%s4 + $0x4] sm:$0xf]
    %v268 = vld [vmem:[%s4 + $0x8] sm:$0xf]
    %v269 = vld [vmem:[%s4 + $0xc] sm:$0xf]
    %v270 = vpack.c.bf16 %v255, %v252
    %v271 = vpack.c.bf16 %v263, %v260
    %v272 = vld [vmem:[%s5] sm:$0xff]
    %v273 = vld [vmem:[%s5 + $0x8] sm:$0xff]
    %v274 = vld [vmem:[%s5 + $0x10] sm:$0xff]
    %v275 = vld [vmem:[%s5 + $0x18] sm:$0xff]
    %277 = vset.pattern.permute.xlu0 0
    %278 = vperm.xlu0 %277, %v272
    %v279 = vpop.permute.xlu0 %278
    %282 = vset.pattern.permute.xlu0 0
    %283 = vperm.xlu0 %282, %v273
    %v284 = vpop.permute.xlu0 %283
    %287 = vset.pattern.permute.xlu0 0
    %288 = vperm.xlu0 %287, %v274
    %v289 = vpop.permute.xlu0 %288
    %292 = vset.pattern.permute.xlu0 0
    %293 = vperm.xlu0 %292, %v275
    %v294 = vpop.permute.xlu0 %293
    %v300 = vunpack.c.l.b16 %v266
    %v301 = vunpack.c.l.b16 %v267
    %v302 = vunpack.c.l.b16 %v268
    %v303 = vunpack.c.l.b16 %v269
    %v304 = vpack.c.b16 %v301, %v300
    %v305 = vpack.c.b16 %v303, %v302
    %v307 = vsel %vm210, %v304, 0
    %v310 = vsel %vm210, %v305, 0
    %312 = vmatprep.subr.bf16.mxu0 0
    %313 = vmatpush1.bf16.msra.mxu0 %v270
    %314 = vmatprep.subr.bf16.mxu0 0
    %315 = vmatpush1.bf16.msra.mxu0 %v271
    %316 = vmatprep.subr.bf16.mxu0 0
    %317 = vmatpush1.bf16.msra.mxu0 0
    %318 = vmatprep.subr.bf16.mxu0 0
    %319 = vmatpush1.bf16.msra.mxu0 0
    %320 = vmatprep.subr.bf16.mxu0 0
    %321 = vmatpush1.bf16.msra.mxu0 0
    %322 = vmatprep.subr.bf16.mxu0 0
    %323 = vmatpush1.bf16.msra.mxu0 0
    %324 = vmatprep.subr.bf16.mxu0 0
    %325 = vmatpush1.bf16.msra.mxu0 0
    %326 = vmatprep.subr.bf16.mxu0 0
    %327 = vmatpush1.bf16.msra.mxu0 0
    %328 = vmatprep.subr.bf16.mxu0 0
    %329 = vmatpush1.bf16.msra.mxu0 0
    %330 = vmatprep.subr.bf16.mxu0 0
    %331 = vmatpush1.bf16.msra.mxu0 0
    %332 = vmatprep.subr.bf16.mxu0 0
    %333 = vmatpush1.bf16.msra.mxu0 0
    %334 = vmatprep.subr.bf16.mxu0 0
    %335 = vmatpush1.bf16.msra.mxu0 0
    %336 = vmatprep.subr.bf16.mxu0 0
    %337 = vmatpush1.bf16.msra.mxu0 0
    %338 = vmatprep.subr.bf16.mxu0 0
    %339 = vmatpush1.bf16.msra.mxu0 0
    %340 = vmatprep.subr.bf16.mxu0 0
    %341 = vmatpush1.bf16.msra.mxu0 0
    %342 = vmatprep.subr.bf16.mxu0 0
    %343 = vmatpush1.bf16.msra.mxu0 0
    %344 = vmatprep.mubr.bf16.mxu0 0
    %345 = vmatmul.mubr.bf16.gmra.mrb[0].mxu0 %v307
    %v346 = vpop.f32.mrb[0].mxu0
    %v347 = vadd.f32 %v279, %v346
    %v348 = vpop.f32.mrb[0].mxu0
    %v349 = vpop.f32.mrb[0].mxu0
    %v350 = vadd.f32 %v284, %v349
    %v351 = vpop.f32.mrb[0].mxu0
    %352 = vmatprep.mubr.bf16.mxu0 0
    %353 = vmatmul.mubr.bf16.gmra.mrb[0].mxu0 %v310
    %v354 = vpop.f32.mrb[0].mxu0
    %v355 = vadd.f32 %v289, %v354
    %v356 = vpop.f32.mrb[0].mxu0
    %v357 = vpop.f32.mrb[0].mxu0
    %v358 = vadd.f32 %v294, %v357
    %v359 = vpop.f32.mrb[0].mxu0
    %360 = vdwg.mxu0
    %v361 = vmul.f32 %v347, %v347
    %v362 = vmul.f32 %v350, %v350
    %v363 = vmul.f32 %v355, %v355
    %v364 = vmul.f32 %v358, %v358
    %v365 = vmul.f32 %v347, %v361
    %v366 = vmul.f32 %v350, %v362
    %v367 = vmul.f32 %v355, %v363
    %v368 = vmul.f32 %v358, %v364
    %v369 = vmul.f32 %v365, 0.044715
    %v370 = vmul.f32 %v366, 0.044715
    %v371 = vmul.f32 %v367, 0.044715
    %v372 = vmul.f32 %v368, 0.044715
    %v373 = vadd.f32 %v347, %v369
    %v374 = vadd.f32 %v350, %v370
    %v375 = vadd.f32 %v355, %v371
    %v376 = vadd.f32 %v358, %v372
    %v377 = vmul.f32 %v373, 0.7978846
    %v378 = vmul.f32 %v374, 0.7978846
    %v379 = vmul.f32 %v375, 0.7978846
    %v380 = vmul.f32 %v376, 0.7978846
    %v381 = vtanh.pop %v377
    %v382 = vtanh.pop %v378
    %v383 = vtanh.pop %v379
    %v384 = vtanh.pop %v380
    %v385 = vadd.f32 %v381, 1.0
    %v386 = vadd.f32 %v382, 1.0
    %v387 = vadd.f32 %v383, 1.0
    %v388 = vadd.f32 %v384, 1.0
    %v389 = vmul.f32 %v385, 0.5
    %v390 = vmul.f32 %v386, 0.5
    %v391 = vmul.f32 %v387, 0.5
    %v392 = vmul.f32 %v388, 0.5
    %v393 = vmul.f32 %v347, %v389
    %v394 = vmul.f32 %v350, %v390
    %v395 = vmul.f32 %v355, %v391
    %v396 = vmul.f32 %v358, %v392
    %397 = vst.msk [vmem:[#allocation6] sm:$0xff] %vm210, %v393
    %398 = vst.msk [vmem:[#allocation6 + $0x8] sm:$0xff] %vm210, %v394
    %399 = vst.msk [vmem:[#allocation6 + $0x10] sm:$0xff] %vm210, %v395
    %400 = vst.msk [vmem:[#allocation6 + $0x18] sm:$0xff] %vm210, %v396
    // Predicated region
    $region30: #{tpu_custom_call.1} parent=1 // pred_check
      _
    $region31: #{tpu_custom_call.1} parent=1 // pred_check_branch
      %402 = sbr.rel (0) target = $region33
    $region32: #{tpu_custom_call.1} parent=1 // pred_region
      %s404 = ssub.s32 512, 512
      %405 = vsyncadd [#allocation5], %s404
      %s406 = sshll.u32 [#allocation6], 4
      %s407 = int_to_ptr.vmem [resolvable:$true] %s406
      %412 = dma.vmem_to_hbm [thread:$0]  %s407, 512, %s6, [#allocation5], 128, 128, 8
    $region33: #{tpu_custom_call.1} parent=1 // pred_fallthru
      _
    // Predicated region
    $region34: #{tpu_custom_call.1} parent=1 // pred_check
      _
    $region35: #{tpu_custom_call.1} parent=1 // pred_check_branch
      %414 = sbr.rel (0) target = $region37
    $region36: #{tpu_custom_call.1} parent=1 // pred_region
      %415 = dma.done [#allocation5], 512
    $region37: #{tpu_custom_call.1} parent=1 // pred_fallthru
      _
    %416 = vsyncpa [#allocation4], 1
    %417 = vsyncpa [#allocation5], 1

</llo_original>
